<compile_context>
chip_gen: v6e
topology: v6e:2x2x1
jax: 0.10.0
libtpu: 0.0.40
codegen_flags: <defaults>
</compile_context>

<pallas_src>
import math

import jax
import jax.numpy as jnp
from jax.experimental import pallas as pl
from jax.experimental.pallas import tpu as pltpu


def _attention_kernel(q_ref, k_ref, v_ref, o_ref, *, scale):
    # Each grid step handles TB batch elements (block shape (TB, L, D)).
    # Fold the 1/sqrt(D) scale into Q (Lq*D multiplies instead of Lq*Lk).
    q = q_ref[...] * jnp.asarray(scale, dtype=q_ref.dtype)   # (TB, Lq, D)
    k = k_ref[...]                                           # (TB, Lk, D)
    v = v_ref[...]                                           # (TB, Lk, Dv)

    # score = Q @ K^T (batched, contracting last dims -> no materialized transpose).
    score = jnp.einsum(
        "bqd,bkd->bqk", q, k, preferred_element_type=jnp.float32
    )  # (TB, Lq, Lk) f32

    # restricted softmax with margin=0 (f32 math).
    m = jnp.maximum(jnp.max(score, axis=-1, keepdims=True), 0.0)
    e = jnp.exp(score - m)
    denom = jnp.sum(e, axis=-1, keepdims=True) + jnp.exp(-m)
    p = e * pl.reciprocal(denom, approx=True)

    # out = P @ V (batched); feed P in V's dtype for native MXU throughput.
    out = jnp.einsum(
        "bqk,bkd->bqd", p.astype(v.dtype), v, preferred_element_type=jnp.float32
    )  # (TB, Lq, Dv)
    o_ref[...] = out.astype(o_ref.dtype)


def _pick_batch_tile(B, Lq, Lk, D, Dv, itemsize, budget_bytes=16 * 1024 * 1024):
    """Largest divisor of B whose double-buffered tile footprint fits the budget."""
    per_b = (
        2 * (Lq * D + Lk * D + Lk * Dv + Lq * Dv) * itemsize  # double-buffered I/O
        + 3 * Lq * Lk * 4                                     # score/e/p f32 scratch
        + 2 * Lq * Dv * 4                                     # f32 accum headroom
    )
    cap = max(1, min(B, budget_bytes // max(per_b, 1)))
    for tb in range(min(cap, B), 0, -1):
        if B % tb == 0:
            return tb
    return 1


def attention(query, key, value):
    """query: [B, Lq, D], key: [B, Lk, D], value: [B, Lk, Dv] -> [B, Lq, Dv]"""
    assert query.ndim == key.ndim == value.ndim == 3
    assert query.shape[-1] == key.shape[-1]
    assert key.shape[-2] == value.shape[-2]
    assert query.shape[0] == key.shape[0] == value.shape[0]

    B, Lq, D = query.shape
    _, Lk, Dv = value.shape
    scale = 1.0 / math.sqrt(D)

    tb = _pick_batch_tile(B, Lq, Lk, D, Dv, query.dtype.itemsize)
    grid = (B // tb,)

    kernel = lambda q, k, v, o: _attention_kernel(q, k, v, o, scale=scale)

    return pl.pallas_call(
        kernel,
        out_shape=jax.ShapeDtypeStruct((B, Lq, Dv), query.dtype),
        grid_spec=pltpu.PrefetchScalarGridSpec(
            num_scalar_prefetch=0,
            grid=grid,
            in_specs=[
                pl.BlockSpec((tb, Lq, D), lambda b: (b, 0, 0)),
                pl.BlockSpec((tb, Lk, D), lambda b: (b, 0, 0)),
                pl.BlockSpec((tb, Lk, Dv), lambda b: (b, 0, 0)),
            ],
            out_specs=pl.BlockSpec((tb, Lq, Dv), lambda b: (b, 0, 0)),
        ),
        compiler_params=pltpu.CompilerParams(
            dimension_semantics=("parallel",),
            vmem_limit_bytes=64 * 1024 * 1024,
        ),
    )(query, key, value)


def _reference(query, key, value):
    # Pure-JAX reference for correctness check.
    D = key.shape[-1]
    score = jnp.einsum("bqd,bkd->bqk", query, key) / math.sqrt(D)
    src_max = jnp.maximum(jnp.max(score, axis=-1, keepdims=True), 0.0)
    e = jnp.exp(score - src_max)
    p = e / (jnp.sum(e, axis=-1, keepdims=True) + jnp.exp(-src_max))
    return jnp.einsum("bqk,bkd->bqd", p, value)


if __name__ == "__main__":
    key0 = jax.random.PRNGKey(0)
    kq, kk, kv = jax.random.split(key0, 3)

    B, Lq, Lk, D, Dv = 2, 16, 8, 32, 32
    query = jax.random.normal(kq, (B, Lq, D), dtype=jnp.float32)
    key_ = jax.random.normal(kk, (B, Lk, D), dtype=jnp.float32)
    value = jax.random.normal(kv, (B, Lk, Dv), dtype=jnp.float32)

    out = attention(query, key_, value)
    out = jax.block_until_ready(out)

    ref = _reference(query, key_, value)
    assert out.shape == (B, Lq, Dv)
    # Tolerance relaxed vs. 1e-5 because of the EUP approximate reciprocal.
    assert jnp.allclose(out, ref, atol=1e-2, rtol=1e-2)

    print("KERNEL_OK")
</pallas_src>

<mosaic_0001>
module attributes {stable_mosaic.version = 11 : i64} {
  func.func @_lambda_(%arg0: i32, %arg1: memref<2x16x32xf32, #tpu.memory_space<vmem>>, %arg2: memref<2x8x32xf32, #tpu.memory_space<vmem>>, %arg3: memref<2x8x32xf32, #tpu.memory_space<vmem>>, %arg4: memref<2x16x32xf32, #tpu.memory_space<vmem>>) attributes {dimension_semantics = [#tpu.dimension_semantics<parallel>], iteration_bounds = array<i64: 1>, scalar_prefetch = 0 : i64, scratch_operands = 0 : i64, tpu.core_type = #tpu.core_type<tc>, window_params = [{transform_indices = @transform_0, window_bounds = array<i64: 2, 16, 32>}, {transform_indices = @transform_1, window_bounds = array<i64: 2, 8, 32>}, {transform_indices = @transform_2, window_bounds = array<i64: 2, 8, 32>}, {transform_indices = @transform_3, window_bounds = array<i64: 2, 16, 32>}]} {
    %c0 = arith.constant 0 : index
    %c0_0 = arith.constant 0 : index
    %c0_1 = arith.constant 0 : index
    %0 = vector.load %arg1[%c0, %c0_0, %c0_1] : memref<2x16x32xf32, #tpu.memory_space<vmem>>, vector<2x16x32xf32>
    %cst = arith.constant 0.176776692 : f32
    %1 = vector.broadcast %cst : f32 to vector<2x16x32xf32>
    %2 = arith.mulf %0, %1 : vector<2x16x32xf32>
    %c0_2 = arith.constant 0 : index
    %c0_3 = arith.constant 0 : index
    %c0_4 = arith.constant 0 : index
    %3 = vector.load %arg2[%c0_2, %c0_3, %c0_4] : memref<2x8x32xf32, #tpu.memory_space<vmem>>, vector<2x8x32xf32>
    %c0_5 = arith.constant 0 : index
    %c0_6 = arith.constant 0 : index
    %c0_7 = arith.constant 0 : index
    %4 = vector.load %arg3[%c0_5, %c0_6, %c0_7] : memref<2x8x32xf32, #tpu.memory_space<vmem>>, vector<2x8x32xf32>
    "tpu.trace_start"() <{level = 10 : i32, message = "bqd,bkd->bqk"}> : () -> ()
    %cst_8 = arith.constant dense<0.000000e+00> : vector<2x16x8xf32>
    %5 = tpu.matmul %2, %3, %cst_8 {dimension_numbers = #tpu.dot_dimension_numbers<[2], [2], [1], [1], [0, 0, 0, 1, 1, 1], [0], [0]>} : vector<2x16x32xf32>, vector<2x8x32xf32>, vector<2x16x8xf32> -> vector<2x16x8xf32>
    "tpu.trace_stop"() : () -> ()
    %cst_9 = arith.constant dense<0xFF800000> : vector<2x16xf32>
    %6 = vector.multi_reduction <maximumf>, %5, %cst_9 [2] : vector<2x16x8xf32> to vector<2x16xf32>
    %7 = vector.shape_cast %6 : vector<2x16xf32> to vector<2x16x1xf32>
    %cst_10 = arith.constant 0.000000e+00 : f32
    %8 = vector.broadcast %cst_10 : f32 to vector<2x16x1xf32>
    %9 = arith.maximumf %7, %8 : vector<2x16x1xf32>
    %10 = vector.broadcast %9 : vector<2x16x1xf32> to vector<2x16x8xf32>
    %11 = arith.subf %5, %10 : vector<2x16x8xf32>
    %12 = math.exp %11 : vector<2x16x8xf32>
    %cst_11 = arith.constant dense<0.000000e+00> : vector<2x16xf32>
    %13 = vector.multi_reduction <add>, %12, %cst_11 [2] : vector<2x16x8xf32> to vector<2x16xf32>
    %14 = vector.shape_cast %13 : vector<2x16xf32> to vector<2x16x1xf32>
    %cst_12 = arith.constant 0.000000e+00 : f32
    %15 = vector.broadcast %cst_12 : f32 to vector<2x16x1xf32>
    %16 = arith.subf %15, %9 : vector<2x16x1xf32>
    %17 = math.exp %16 : vector<2x16x1xf32>
    %18 = arith.addf %14, %17 : vector<2x16x1xf32>
    %19 = tpu.reciprocal %18 {approx = true} : vector<2x16x1xf32> -> vector<2x16x1xf32>
    %20 = vector.broadcast %19 : vector<2x16x1xf32> to vector<2x16x8xf32>
    %21 = arith.mulf %12, %20 : vector<2x16x8xf32>
    "tpu.trace_start"() <{level = 10 : i32, message = "bqk,bkd->bqd"}> : () -> ()
    %cst_13 = arith.constant dense<0.000000e+00> : vector<2x16x32xf32>
    %22 = tpu.matmul %21, %4, %cst_13 {dimension_numbers = #tpu.dot_dimension_numbers<[2], [1], [1], [2], [0, 0, 0, 1, 1, 2], [0], [0]>} : vector<2x16x8xf32>, vector<2x8x32xf32>, vector<2x16x32xf32> -> vector<2x16x32xf32>
    "tpu.trace_stop"() : () -> ()
    %c0_14 = arith.constant 0 : index
    %c0_15 = arith.constant 0 : index
    %c0_16 = arith.constant 0 : index
    %23 = vector.load %arg4[%c0_14, %c0_15, %c0_16] : memref<2x16x32xf32, #tpu.memory_space<vmem>>, vector<2x16x32xf32>
    tpu.vector_store %arg4[%c0_14, %c0_15, %c0_16], %22 {strides = array<i32>} : memref<2x16x32xf32, #tpu.memory_space<vmem>>, vector<2x16x32xf32>,
    return
  }
  func.func @transform_0(%arg0: i32) -> (i32, i32, i32) {
    %c0_i32 = arith.constant 0 : i32
    %c0_i32_0 = arith.constant 0 : i32
    %c0_i32_1 = arith.constant 0 : i32
    return %arg0, %c0_i32, %c0_i32_0 : i32, i32, i32
  }
  func.func @transform_1(%arg0: i32) -> (i32, i32, i32) {
    %c0_i32 = arith.constant 0 : i32
    %c0_i32_0 = arith.constant 0 : i32
    %c0_i32_1 = arith.constant 0 : i32
    return %arg0, %c0_i32, %c0_i32_0 : i32, i32, i32
  }
  func.func @transform_2(%arg0: i32) -> (i32, i32, i32) {
    %c0_i32 = arith.constant 0 : i32
    %c0_i32_0 = arith.constant 0 : i32
    %c0_i32_1 = arith.constant 0 : i32
    return %arg0, %c0_i32, %c0_i32_0 : i32, i32, i32
  }
  func.func @transform_3(%arg0: i32) -> (i32, i32, i32) {
    %c0_i32 = arith.constant 0 : i32
    %c0_i32_0 = arith.constant 0 : i32
    %c0_i32_1 = arith.constant 0 : i32
    return %arg0, %c0_i32, %c0_i32_0 : i32, i32, i32
  }
}

</mosaic_0001>

<llo_original>
// kernel: tpu_custom_call.1
$region0: #{tpu_custom_call.1}
  #allocation0 [shape = 'u32[]', space=smem, size = 0x4, offset = 0x4, fixed_abs, tag = 'smem constant byte address 0x4 - core index']
  #allocation1 [shape = 'u32[144,128]{1,0:T(1,128)}', space=vmem, size = 0x12000, scoped, tag = 'internal scratch']
  %s0 = inlined_call_operand.hbm [shape: f32[2,16,32], index: 0, kind: input, shape index: {}]
  %s1 = inlined_call_operand.hbm [shape: f32[2,8,32], index: 1, kind: input, shape index: {}]
  %s2 = inlined_call_operand.hbm [shape: f32[2,8,32], index: 2, kind: input, shape index: {}]
  %s3 = inlined_call_operand.hbm [shape: f32[2,16,32], index: 3, kind: output, shape index: {}]
  %s4 = sld [smem:[#allocation0]]
  $region34: #{tpu_custom_call.1} parent=0
    _
  %s6 = ssub.s32 1, %s4
  %s7 = scalar_select 0, %s6, %s4
  $region1: #{tpu_custom_call.1} parent=0
    #allocation2 [shape = 'u8[16384]{0}', space=vmem, size = 0x4000, scoped, tag = 'input window, operand 0, single buffered']
    #allocation3 [shape = 's32[1]{0}', space=sflag, size = 0x4, scoped, tag = 'scoped memory for tpu_custom_call.1']
    #allocation4 [shape = 's32[1]{0}', space=sflag, size = 0x4, scoped, tag = 'scoped memory for tpu_custom_call.1']
    #allocation5 [shape = 'u8[8192]{0}', space=vmem, size = 0x2000, scoped, tag = 'input window, operand 1, single buffered']
    #allocation6 [shape = 's32[1]{0}', space=sflag, size = 0x4, scoped, tag = 'scoped memory for tpu_custom_call.1']
    #allocation7 [shape = 'u8[8192]{0}', space=vmem, size = 0x2000, scoped, tag = 'input window, operand 2, single buffered']
    #allocation8 [shape = 'u8[16384]{0}', space=vmem, size = 0x4000, scoped, tag = 'output window, operand 0, single buffered']
    %8 = vsyncpa [#allocation3], 0
    %9 = vsyncpa [#allocation6], 0
    %10 = vsyncpa [#allocation4], 0
    // Predicated region
    $region2: #{tpu_custom_call.1} parent=1 // pred_check
      _
    $region3: #{tpu_custom_call.1} parent=1 // pred_check_branch
      %12 = sbr.rel (0) target = $region5
    $region4: #{tpu_custom_call.1} parent=1 // pred_region
      %s14 = ssub.s32 512, 512
      %15 = vsyncadd [#allocation3], %s14
      %s16 = sshll.u32 [#allocation2], 4
      %s17 = int_to_ptr.vmem [resolvable:$true] %s16
      %22 = dma.hbm_to_vmem [thread:$0]  %s0, 512, %s17, [#allocation3], 128, 128, 8
    $region5: #{tpu_custom_call.1} parent=1 // pred_fallthru
      _
    // Predicated region
    $region6: #{tpu_custom_call.1} parent=1 // pred_check
      _
    $region7: #{tpu_custom_call.1} parent=1 // pred_check_branch
      %24 = sbr.rel (0) target = $region9
    $region8: #{tpu_custom_call.1} parent=1 // pred_region
      %s26 = ssub.s32 256, 256
      %27 = vsyncadd [#allocation6], %s26
      %s28 = sshll.u32 [#allocation5], 4
      %s29 = int_to_ptr.vmem [resolvable:$true] %s28
      %34 = dma.hbm_to_vmem [thread:$0]  %s1, 256, %s29, [#allocation6], 128, 128, 8
    $region9: #{tpu_custom_call.1} parent=1 // pred_fallthru
      _
    // Predicated region
    $region10: #{tpu_custom_call.1} parent=1 // pred_check
      _
    $region11: #{tpu_custom_call.1} parent=1 // pred_check_branch
      %36 = sbr.rel (0) target = $region13
    $region12: #{tpu_custom_call.1} parent=1 // pred_region
      %s38 = ssub.s32 256, 256
      %39 = vsyncadd [#allocation6], %s38
      %s40 = sshll.u32 [#allocation7], 4
      %s41 = int_to_ptr.vmem [resolvable:$true] %s40
      %46 = dma.hbm_to_vmem [thread:$0]  %s2, 256, %s41, [#allocation6], 128, 128, 8
    $region13: #{tpu_custom_call.1} parent=1 // pred_fallthru
      _
    // Predicated region
    $region14: #{tpu_custom_call.1} parent=1 // pred_check
      _
    $region15: #{tpu_custom_call.1} parent=1 // pred_check_branch
      %48 = sbr.rel (0) target = $region17
    $region16: #{tpu_custom_call.1} parent=1 // pred_region
      %49 = dma.done [#allocation3], 512
    $region17: #{tpu_custom_call.1} parent=1 // pred_fallthru
      _
    // Predicated region
    $region18: #{tpu_custom_call.1} parent=1 // pred_check
      _
    $region19: #{tpu_custom_call.1} parent=1 // pred_check_branch
      %51 = sbr.rel (0) target = $region21
    $region20: #{tpu_custom_call.1} parent=1 // pred_region
      %52 = dma.done [#allocation6], 256
    $region21: #{tpu_custom_call.1} parent=1 // pred_fallthru
      _
    // Predicated region
    $region22: #{tpu_custom_call.1} parent=1 // pred_check
      _
    $region23: #{tpu_custom_call.1} parent=1 // pred_check_branch
      %54 = sbr.rel (0) target = $region25
    $region24: #{tpu_custom_call.1} parent=1 // pred_region
      %55 = dma.done [#allocation6], 256
    $region25: #{tpu_custom_call.1} parent=1 // pred_fallthru
      _
    %v56 = vld [vmem:[#allocation2] sm:$0xff]
    %v57 = vld [vmem:[#allocation2 + $0x8] sm:$0xff]
    %v58 = vld [vmem:[#allocation2 + $0x10] sm:$0xff]
    %v59 = vld [vmem:[#allocation2 + $0x18] sm:$0xff]
    %v60 = vmul.f32 %v56, 0.17677669
    %v61 = vmul.f32 %v57, 0.17677669
    %v62 = vmul.f32 %v58, 0.17677669
    %v63 = vmul.f32 %v59, 0.17677669
    %v64 = vld [vmem:[#allocation5] sm:$0xff]
    %v65 = vld [vmem:[#allocation5 + $0x8] sm:$0xff]
    %v66 = vld [vmem:[#allocation7] sm:$0xff]
    %v67 = vld [vmem:[#allocation7 + $0x8] sm:$0xff]
    %vm68 = vcmask 261120
    %v70 = vsel %vm68, %v60, 0
    %v73 = vsel %vm68, %v61, 0
    %v76 = vsel %vm68, %v64, 0
    %78 = vmatprep.subr.mxu0 0.0
    %79 = vmatpush1.xpose.msra.mxu0 0.0
    %80 = vmatprep.subr.mxu0 0.0
    %81 = vmatpush1.xpose.msra.mxu0 0.0
    %82 = vmatprep.subr.mxu0 0.0
    %83 = vmatpush1.xpose.msra.mxu0 0.0
    %84 = vmatprep.subr.mxu0 0.0
    %85 = vmatpush1.xpose.msra.mxu0 0.0
    %86 = vmatprep.subr.mxu0 0.0
    %87 = vmatpush1.xpose.msra.mxu0 0.0
    %88 = vmatprep.subr.mxu0 0.0
    %89 = vmatpush1.xpose.msra.mxu0 0.0
    %90 = vmatprep.subr.mxu0 0.0
    %91 = vmatpush1.xpose.msra.mxu0 0.0
    %92 = vmatprep.subr.mxu0 0.0
    %93 = vmatpush1.xpose.msra.mxu0 0.0
    %94 = vmatprep.subr.mxu0 0.0
    %95 = vmatpush1.xpose.msra.mxu0 0.0
    %96 = vmatprep.subr.mxu0 0.0
    %97 = vmatpush1.xpose.msra.mxu0 0.0
    %98 = vmatprep.subr.mxu0 0.0
    %99 = vmatpush1.xpose.msra.mxu0 0.0
    %100 = vmatprep.subr.mxu0 0.0
    %101 = vmatpush1.xpose.msra.mxu0 0.0
    %102 = vmatprep.subr.mxu0 0.0
    %103 = vmatpush1.xpose.msra.mxu0 0.0
    %104 = vmatprep.subr.mxu0 0.0
    %105 = vmatpush1.xpose.msra.mxu0 0.0
    %106 = vmatprep.subr.mxu0 0.0
    %107 = vmatpush1.xpose.msra.mxu0 0.0
    %108 = vmatprep.subr.mxu0 0.0
    %109 = vmatpush1.xpose.msra.mxu0 %v76
    %110 = vmatprep.subr.mxu0 0.0
    %111 = vmatpush2.xpose.msra.mxu0 0.0
    %112 = vmatprep.subr.mxu0 0.0
    %113 = vmatpush2.xpose.msra.mxu0 0.0
    %114 = vmatprep.subr.mxu0 0.0
    %115 = vmatpush2.xpose.msra.mxu0 0.0
    %116 = vmatprep.subr.mxu0 0.0
    %117 = vmatpush2.xpose.msra.mxu0 0.0
    %118 = vmatprep.subr.mxu0 0.0
    %119 = vmatpush2.xpose.msra.mxu0 0.0
    %120 = vmatprep.subr.mxu0 0.0
    %121 = vmatpush2.xpose.msra.mxu0 0.0
    %122 = vmatprep.subr.mxu0 0.0
    %123 = vmatpush2.xpose.msra.mxu0 0.0
    %124 = vmatprep.subr.mxu0 0.0
    %125 = vmatpush2.xpose.msra.mxu0 0.0
    %126 = vmatprep.subr.mxu0 0.0
    %127 = vmatpush2.xpose.msra.mxu0 0.0
    %128 = vmatprep.subr.mxu0 0.0
    %129 = vmatpush2.xpose.msra.mxu0 0.0
    %130 = vmatprep.subr.mxu0 0.0
    %131 = vmatpush2.xpose.msra.mxu0 0.0
    %132 = vmatprep.subr.mxu0 0.0
    %133 = vmatpush2.xpose.msra.mxu0 0.0
    %134 = vmatprep.subr.mxu0 0.0
    %135 = vmatpush2.xpose.msra.mxu0 0.0
    %136 = vmatprep.subr.mxu0 0.0
    %137 = vmatpush2.xpose.msra.mxu0 0.0
    %138 = vmatprep.subr.mxu0 0.0
    %139 = vmatpush2.xpose.msra.mxu0 0.0
    %140 = vmatprep.subr.mxu0 0.0
    %141 = vmatpush2.xpose.msra.mxu0 0.0
    %142 = vmatprep.mubr.f32.mxu0 0.0
    %143 = vmatmul.mubr.f32.gmra.mxu0 %v70
    %v144 = vpop.f32.mrf.mxu0
    %v145 = vadd.f32 0.0, %v144
    %v146 = vpop.f32.mrf.mxu0
    %147 = vmatprep.mubr.f32.mxu0 0.0
    %148 = vmatmul.mubr.f32.gmra.mxu0 %v73
    %v149 = vpop.f32.mrf.mxu0
    %v150 = vadd.f32 0.0, %v149
    %v151 = vpop.f32.mrf.mxu0
    %152 = vdwg.mxu0
    %v154 = vsel %vm68, %v62, 0
    %v157 = vsel %vm68, %v63, 0
    %v160 = vsel %vm68, %v65, 0
    %162 = vmatprep.subr.mxu0 0.0
    %163 = vmatpush1.xpose.msra.mxu0 0.0
    %164 = vmatprep.subr.mxu0 0.0
    %165 = vmatpush1.xpose.msra.mxu0 0.0
    %166 = vmatprep.subr.mxu0 0.0
    %167 = vmatpush1.xpose.msra.mxu0 0.0
    %168 = vmatprep.subr.mxu0 0.0
    %169 = vmatpush1.xpose.msra.mxu0 0.0
    %170 = vmatprep.subr.mxu0 0.0
    %171 = vmatpush1.xpose.msra.mxu0 0.0
    %172 = vmatprep.subr.mxu0 0.0
    %173 = vmatpush1.xpose.msra.mxu0 0.0
    %174 = vmatprep.subr.mxu0 0.0
    %175 = vmatpush1.xpose.msra.mxu0 0.0
    %176 = vmatprep.subr.mxu0 0.0
    %177 = vmatpush1.xpose.msra.mxu0 0.0
    %178 = vmatprep.subr.mxu0 0.0
    %179 = vmatpush1.xpose.msra.mxu0 0.0
    %180 = vmatprep.subr.mxu0 0.0
    %181 = vmatpush1.xpose.msra.mxu0 0.0
    %182 = vmatprep.subr.mxu0 0.0
    %183 = vmatpush1.xpose.msra.mxu0 0.0
    %184 = vmatprep.subr.mxu0 0.0
    %185 = vmatpush1.xpose.msra.mxu0 0.0
    %186 = vmatprep.subr.mxu0 0.0
    %187 = vmatpush1.xpose.msra.mxu0 0.0
    %188 = vmatprep.subr.mxu0 0.0
    %189 = vmatpush1.xpose.msra.mxu0 0.0
    %190 = vmatprep.subr.mxu0 0.0
    %191 = vmatpush1.xpose.msra.mxu0 0.0
    %192 = vmatprep.subr.mxu0 0.0
    %193 = vmatpush1.xpose.msra.mxu0 %v160
    %194 = vmatprep.subr.mxu0 0.0
    %195 = vmatpush2.xpose.msra.mxu0 0.0
    %196 = vmatprep.subr.mxu0 0.0
    %197 = vmatpush2.xpose.msra.mxu0 0.0
    %198 = vmatprep.subr.mxu0 0.0
    %199 = vmatpush2.xpose.msra.mxu0 0.0
    %200 = vmatprep.subr.mxu0 0.0
    %201 = vmatpush2.xpose.msra.mxu0 0.0
    %202 = vmatprep.subr.mxu0 0.0
    %203 = vmatpush2.xpose.msra.mxu0 0.0
    %204 = vmatprep.subr.mxu0 0.0
    %205 = vmatpush2.xpose.msra.mxu0 0.0
    %206 = vmatprep.subr.mxu0 0.0
    %207 = vmatpush2.xpose.msra.mxu0 0.0
    %208 = vmatprep.subr.mxu0 0.0
    %209 = vmatpush2.xpose.msra.mxu0 0.0
    %210 = vmatprep.subr.mxu0 0.0
    %211 = vmatpush2.xpose.msra.mxu0 0.0
    %212 = vmatprep.subr.mxu0 0.0
    %213 = vmatpush2.xpose.msra.mxu0 0.0
    %214 = vmatprep.subr.mxu0 0.0
    %215 = vmatpush2.xpose.msra.mxu0 0.0
    %216 = vmatprep.subr.mxu0 0.0
    %217 = vmatpush2.xpose.msra.mxu0 0.0
    %218 = vmatprep.subr.mxu0 0.0
    %219 = vmatpush2.xpose.msra.mxu0 0.0
    %220 = vmatprep.subr.mxu0 0.0
    %221 = vmatpush2.xpose.msra.mxu0 0.0
    %222 = vmatprep.subr.mxu0 0.0
    %223 = vmatpush2.xpose.msra.mxu0 0.0
    %224 = vmatprep.subr.mxu0 0.0
    %225 = vmatpush2.xpose.msra.mxu0 0.0
    %226 = vmatprep.mubr.f32.mxu0 0.0
    %227 = vmatmul.mubr.f32.gmra.mxu0 %v154
    %v228 = vpop.f32.mrf.mxu0
    %v229 = vadd.f32 0.0, %v228
    %v230 = vpop.f32.mrf.mxu0
    %231 = vmatprep.mubr.f32.mxu0 0.0
    %232 = vmatmul.mubr.f32.gmra.mxu0 %v157
    %v233 = vpop.f32.mrf.mxu0
    %v234 = vadd.f32 0.0, %v233
    %v235 = vpop.f32.mrf.mxu0
    %236 = vdwg.mxu0
    %vm237 = vcmask 64512
    %v238 = vsel %vm237, %v145, -inf
    %239 = vmax.xlane.f32.xlu0 %v238
    %v240 = vpop.xlane.xlu0 %239
    %v241 = vsel %vm237, %v150, -inf
    %242 = vmax.xlane.f32.xlu0 %v241
    %v243 = vpop.xlane.xlu0 %242
    %v244 = vsel %vm237, %v229, -inf
    %245 = vmax.xlane.f32.xlu0 %v244
    %v246 = vpop.xlane.xlu0 %245
    %v247 = vsel %vm237, %v234, -inf
    %248 = vmax.xlane.f32.xlu0 %v247
    %v249 = vpop.xlane.xlu0 %248
    %v250 = vmax.f32 %v240, 0.0
    %v251 = vmax.f32 %v243, 0.0
    %v252 = vmax.f32 %v246, 0.0
    %v253 = vmax.f32 %v249, 0.0
    %v254 = vsub.f32 %v145, %v250
    %v255 = vsub.f32 %v150, %v251
    %v256 = vsub.f32 %v229, %v252
    %v257 = vsub.f32 %v234, %v253
    %v258 = vmul.f32 %v254, 1.442695
    %v259 = vpow.pop %v258
    %v260 = vmul.f32 %v255, 1.442695
    %v261 = vpow.pop %v260
    %v262 = vmul.f32 %v256, 1.442695
    %v263 = vpow.pop %v262
    %v264 = vmul.f32 %v257, 1.442695
    %v265 = vpow.pop %v264
    %v266 = vsel %vm237, %v259, 0.0
    %267 = vadd.xlane.f32.xlu0 %v266
    %v268 = vpop.xlane.xlu0 %267
    %v269 = vsel %vm237, %v261, 0.0
    %270 = vadd.xlane.f32.xlu0 %v269
    %v271 = vpop.xlane.xlu0 %270
    %v272 = vsel %vm237, %v263, 0.0
    %273 = vadd.xlane.f32.xlu0 %v272
    %v274 = vpop.xlane.xlu0 %273
    %v275 = vsel %vm237, %v265, 0.0
    %276 = vadd.xlane.f32.xlu0 %v275
    %v277 = vpop.xlane.xlu0 %276
    %v278 = vsub.f32 0.0, %v250
    %v279 = vsub.f32 0.0, %v251
    %v280 = vsub.f32 0.0, %v252
    %v281 = vsub.f32 0.0, %v253
    %v282 = vmul.f32 %v278, 1.442695
    %v283 = vpow.pop %v282
    %v284 = vmul.f32 %v279, 1.442695
    %v285 = vpow.pop %v284
    %v286 = vmul.f32 %v280, 1.442695
    %v287 = vpow.pop %v286
    %v288 = vmul.f32 %v281, 1.442695
    %v289 = vpow.pop %v288
    %v290 = vadd.f32 %v268, %v283
    %v291 = vadd.f32 %v271, %v285
    %v292 = vadd.f32 %v274, %v287
    %v293 = vadd.f32 %v277, %v289
    %v294 = vrcp.pop %v290
    %v295 = vrcp.pop %v291
    %v296 = vrcp.pop %v292
    %v297 = vrcp.pop %v293
    %v298 = vmul.f32 %v259, %v294
    %v299 = vmul.f32 %v261, %v295
    %v300 = vmul.f32 %v263, %v296
    %v301 = vmul.f32 %v265, %v297
    %v303 = vsel %vm237, %v298, 0
    %v306 = vsel %vm237, %v299, 0
    %308 = vmatprep.subr.mxu0 0.0
    %309 = vmatpush1.msra.mxu0 0.0
    %310 = vmatprep.subr.mxu0 0.0
    %311 = vmatpush1.msra.mxu0 0.0
    %312 = vmatprep.subr.mxu0 0.0
    %313 = vmatpush1.msra.mxu0 0.0
    %314 = vmatprep.subr.mxu0 0.0
    %315 = vmatpush1.msra.mxu0 0.0
    %316 = vmatprep.subr.mxu0 0.0
    %317 = vmatpush1.msra.mxu0 0.0
    %318 = vmatprep.subr.mxu0 0.0
    %319 = vmatpush1.msra.mxu0 0.0
    %320 = vmatprep.subr.mxu0 0.0
    %321 = vmatpush1.msra.mxu0 0.0
    %322 = vmatprep.subr.mxu0 0.0
    %323 = vmatpush1.msra.mxu0 0.0
    %324 = vmatprep.subr.mxu0 0.0
    %325 = vmatpush1.msra.mxu0 0.0
    %326 = vmatprep.subr.mxu0 0.0
    %327 = vmatpush1.msra.mxu0 0.0
    %328 = vmatprep.subr.mxu0 0.0
    %329 = vmatpush1.msra.mxu0 0.0
    %330 = vmatprep.subr.mxu0 0.0
    %331 = vmatpush1.msra.mxu0 0.0
    %332 = vmatprep.subr.mxu0 0.0
    %333 = vmatpush1.msra.mxu0 0.0
    %334 = vmatprep.subr.mxu0 0.0
    %335 = vmatpush1.msra.mxu0 0.0
    %336 = vmatprep.subr.mxu0 0.0
    %337 = vmatpush1.msra.mxu0 0.0
    %338 = vmatprep.subr.mxu0 0.0
    %339 = vmatpush1.msra.mxu0 %v66
    %340 = vmatprep.subr.mxu0 0.0
    %341 = vmatpush2.msra.mxu0 0.0
    %342 = vmatprep.subr.mxu0 0.0
    %343 = vmatpush2.msra.mxu0 0.0
    %344 = vmatprep.subr.mxu0 0.0
    %345 = vmatpush2.msra.mxu0 0.0
    %346 = vmatprep.subr.mxu0 0.0
    %347 = vmatpush2.msra.mxu0 0.0
    %348 = vmatprep.subr.mxu0 0.0
    %349 = vmatpush2.msra.mxu0 0.0
    %350 = vmatprep.subr.mxu0 0.0
    %351 = vmatpush2.msra.mxu0 0.0
    %352 = vmatprep.subr.mxu0 0.0
    %353 = vmatpush2.msra.mxu0 0.0
    %354 = vmatprep.subr.mxu0 0.0
    %355 = vmatpush2.msra.mxu0 0.0
    %356 = vmatprep.subr.mxu0 0.0
    %357 = vmatpush2.msra.mxu0 0.0
    %358 = vmatprep.subr.mxu0 0.0
    %359 = vmatpush2.msra.mxu0 0.0
    %360 = vmatprep.subr.mxu0 0.0
    %361 = vmatpush2.msra.mxu0 0.0
    %362 = vmatprep.subr.mxu0 0.0
    %363 = vmatpush2.msra.mxu0 0.0
    %364 = vmatprep.subr.mxu0 0.0
    %365 = vmatpush2.msra.mxu0 0.0
    %366 = vmatprep.subr.mxu0 0.0
    %367 = vmatpush2.msra.mxu0 0.0
    %368 = vmatprep.subr.mxu0 0.0
    %369 = vmatpush2.msra.mxu0 0.0
    %370 = vmatprep.subr.mxu0 0.0
    %371 = vmatpush2.msra.mxu0 0.0
    %372 = vmatprep.mubr.f32.mxu0 0.0
    %373 = vmatmul.mubr.f32.gmra.mxu0 %v303
    %v374 = vpop.f32.mrf.mxu0
    %v375 = vadd.f32 0.0, %v374
    %v376 = vpop.f32.mrf.mxu0
    %377 = vmatprep.mubr.f32.mxu0 0.0
    %378 = vmatmul.mubr.f32.gmra.mxu0 %v306
    %v379 = vpop.f32.mrf.mxu0
    %v380 = vadd.f32 0.0, %v379
    %v381 = vpop.f32.mrf.mxu0
    %382 = vdwg.mxu0
    %v384 = vsel %vm237, %v300, 0
    %v387 = vsel %vm237, %v301, 0
    %389 = vmatprep.subr.mxu0 0.0
    %390 = vmatpush1.msra.mxu0 0.0
    %391 = vmatprep.subr.mxu0 0.0
    %392 = vmatpush1.msra.mxu0 0.0
    %393 = vmatprep.subr.mxu0 0.0
    %394 = vmatpush1.msra.mxu0 0.0
    %395 = vmatprep.subr.mxu0 0.0
    %396 = vmatpush1.msra.mxu0 0.0
    %397 = vmatprep.subr.mxu0 0.0
    %398 = vmatpush1.msra.mxu0 0.0
    %399 = vmatprep.subr.mxu0 0.0
    %400 = vmatpush1.msra.mxu0 0.0
    %401 = vmatprep.subr.mxu0 0.0
    %402 = vmatpush1.msra.mxu0 0.0
    %403 = vmatprep.subr.mxu0 0.0
    %404 = vmatpush1.msra.mxu0 0.0
    %405 = vmatprep.subr.mxu0 0.0
    %406 = vmatpush1.msra.mxu0 0.0
    %407 = vmatprep.subr.mxu0 0.0
    %408 = vmatpush1.msra.mxu0 0.0
    %409 = vmatprep.subr.mxu0 0.0
    %410 = vmatpush1.msra.mxu0 0.0
    %411 = vmatprep.subr.mxu0 0.0
    %412 = vmatpush1.msra.mxu0 0.0
    %413 = vmatprep.subr.mxu0 0.0
    %414 = vmatpush1.msra.mxu0 0.0
    %415 = vmatprep.subr.mxu0 0.0
    %416 = vmatpush1.msra.mxu0 0.0
    %417 = vmatprep.subr.mxu0 0.0
    %418 = vmatpush1.msra.mxu0 0.0
    %419 = vmatprep.subr.mxu0 0.0
    %420 = vmatpush1.msra.mxu0 %v67
    %421 = vmatprep.subr.mxu0 0.0
    %422 = vmatpush2.msra.mxu0 0.0
    %423 = vmatprep.subr.mxu0 0.0
    %424 = vmatpush2.msra.mxu0 0.0
    %425 = vmatprep.subr.mxu0 0.0
    %426 = vmatpush2.msra.mxu0 0.0
    %427 = vmatprep.subr.mxu0 0.0
    %428 = vmatpush2.msra.mxu0 0.0
    %429 = vmatprep.subr.mxu0 0.0
    %430 = vmatpush2.msra.mxu0 0.0
    %431 = vmatprep.subr.mxu0 0.0
    %432 = vmatpush2.msra.mxu0 0.0
    %433 = vmatprep.subr.mxu0 0.0
    %434 = vmatpush2.msra.mxu0 0.0
    %435 = vmatprep.subr.mxu0 0.0
    %436 = vmatpush2.msra.mxu0 0.0
    %437 = vmatprep.subr.mxu0 0.0
    %438 = vmatpush2.msra.mxu0 0.0
    %439 = vmatprep.subr.mxu0 0.0
    %440 = vmatpush2.msra.mxu0 0.0
    %441 = vmatprep.subr.mxu0 0.0
    %442 = vmatpush2.msra.mxu0 0.0
    %443 = vmatprep.subr.mxu0 0.0
    %444 = vmatpush2.msra.mxu0 0.0
    %445 = vmatprep.subr.mxu0 0.0
    %446 = vmatpush2.msra.mxu0 0.0
    %447 = vmatprep.subr.mxu0 0.0
    %448 = vmatpush2.msra.mxu0 0.0
    %449 = vmatprep.subr.mxu0 0.0
    %450 = vmatpush2.msra.mxu0 0.0
    %451 = vmatprep.subr.mxu0 0.0
    %452 = vmatpush2.msra.mxu0 0.0
    %453 = vmatprep.mubr.f32.mxu0 0.0
    %454 = vmatmul.mubr.f32.gmra.mxu0 %v384
    %v455 = vpop.f32.mrf.mxu0
    %v456 = vadd.f32 0.0, %v455
    %v457 = vpop.f32.mrf.mxu0
    %458 = vmatprep.mubr.f32.mxu0 0.0
    %459 = vmatmul.mubr.f32.gmra.mxu0 %v387
    %v460 = vpop.f32.mrf.mxu0
    %v461 = vadd.f32 0.0, %v460
    %v462 = vpop.f32.mrf.mxu0
    %463 = vdwg.mxu0
    %464 = vst.msk [vmem:[#allocation8] sm:$0xff] %vm68, %v375
    %465 = vst.msk [vmem:[#allocation8 + $0x8] sm:$0xff] %vm68, %v380
    %466 = vst.msk [vmem:[#allocation8 + $0x10] sm:$0xff] %vm68, %v456
    %467 = vst.msk [vmem:[#allocation8 + $0x18] sm:$0xff] %vm68, %v461
    // Predicated region
    $region26: #{tpu_custom_call.1} parent=1 // pred_check
      _
    $region27: #{tpu_custom_call.1} parent=1 // pred_check_branch
      %469 = sbr.rel (0) target = $region29
    $region28: #{tpu_custom_call.1} parent=1 // pred_region
      %s471 = ssub.s32 512, 512
      %472 = vsyncadd [#allocation4], %s471
      %s473 = sshll.u32 [#allocation8], 4
      %s474 = int_to_ptr.vmem [resolvable:$true] %s473
      %479 = dma.vmem_to_hbm [thread:$0]  %s474, 512, %s3, [#allocation4], 128, 128, 8
    $region29: #{tpu_custom_call.1} parent=1 // pred_fallthru
      _
    // Predicated region
    $region30: #{tpu_custom_call.1} parent=1 // pred_check
      _
    $region31: #{tpu_custom_call.1} parent=1 // pred_check_branch
      %481 = sbr.rel (0) target = $region33
    $region32: #{tpu_custom_call.1} parent=1 // pred_region
      %482 = dma.done [#allocation4], 512
    $region33: #{tpu_custom_call.1} parent=1 // pred_fallthru
      _
    %483 = vsyncpa [#allocation3], 1
    %484 = vsyncpa [#allocation6], 1
    %485 = vsyncpa [#allocation4], 1

</llo_original>
